<compile_context>
chip_gen: v7x
topology: tpu7x:2x2x1
jax: 0.10.0
libtpu: 0.0.40
codegen_flags: <defaults>
</compile_context>

<pallas_src>
import functools
import math

import jax
import jax.numpy as jnp
from jax.experimental import pallas as pl
from jax.experimental.pallas import tpu as pltpu


def _cdiv(a, b):
    return -(-a // b)


def _mask_cache_kernel(params_ref, xyz_ref, dens_ref, out_ref, *,
                       Dg, Hg, Wg, fold_threshold):
    # params_ref : SMEM (9,) f32
    #   [min_x, min_y, min_z, inv_ext_x, inv_ext_y, inv_ext_z, p6, p7, p8]
    #   fold_threshold: p6 = dens_thres (p7, p8 unused)
    #   else          : p6 = act_shift, p7 = voxel_size_ratio, p8 = thres
    # xyz_ref    : VMEM (3, TN) f32      rows = world x, y, z   (points on the lane axis)
    # dens_ref   : VMEM (Wg, Dg*Hg) bf16 density[d, h, w] stored at dens_ref[w, d*Hg + h]
    # out_ref    : VMEM (1, TN) int32
    tn = xyz_ref.shape[1]

    x = xyz_ref[0:1, :]  # (1, TN) world x -> D axis of the grid
    y = xyz_ref[1:2, :]  #          world y -> H axis
    z = xyz_ref[2:3, :]  #          world z -> W axis   (reproduces the .flip(-1))

    # align_corners=True pixel positions: norm * (size - 1)
    pd = (x - params_ref[0]) * params_ref[3] * (Dg - 1)   # (1, TN)
    ph = (y - params_ref[1]) * params_ref[4] * (Hg - 1)
    pw = (z - params_ref[2]) * params_ref[5] * (Wg - 1)

    def hat(p, size):
        # (size, TN) trilinear interpolation weights: max(0, 1 - |p - i|), i in [0, size).
        # Out-of-range positions get weight 0 at every in-range index, which reproduces
        # grid_sample's zeros padding.
        idx = jax.lax.broadcasted_iota(jnp.int32, (size, tn), 0).astype(jnp.float32)
        return jnp.maximum(0.0, 1.0 - jnp.abs(p - idx))

    # Per-axis hats (small, f32 on the VPU), then a single bf16 outer-product expansion to
    # the fused (D*H, TN) contraction weights: w_dh[d*Hg + h, n] = w_d[d, n] * w_h[h, n].
    w_d = hat(pd, Dg).astype(jnp.bfloat16)    # (Dg, TN)
    w_h = hat(ph, Hg).astype(jnp.bfloat16)    # (Hg, TN)
    w_w = hat(pw, Wg)                         # (Wg, TN) f32, finished on the VPU
    w_dh = (w_d.reshape(Dg, 1, tn) * w_h.reshape(1, Hg, tn)).reshape(Dg * Hg, tn)

    # Big contraction (K = D*H) on the MXU, bf16 in / f32 accumulate; points stay on lanes.
    t = jnp.dot(dens_ref[...], w_dh, preferred_element_type=jnp.float32)   # (Wg, TN)

    # Small W axis: elementwise weight + 16-deep sublane reduce (XLU), still lane-dense.
    density = jnp.sum(w_w * t, axis=0, keepdims=True)                      # (1, TN)

    if fold_threshold:
        # alpha >= thres  <=>  density >= dens_thres   (alpha monotone in density)
        mask = density >= params_ref[6]
    else:
        # Fallback: exact activation (torch softplus with threshold=20).
        v = density + params_ref[6]
        sp = jnp.where(v > 20.0, v, jnp.log1p(jnp.exp(jnp.minimum(v, 20.0))))
        alpha = 1.0 - jnp.exp(-sp * params_ref[7])
        mask = alpha >= params_ref[8]

    out_ref[...] = mask.astype(jnp.int32)


def _fold_alpha_threshold(act_shift, voxel_size_ratio, thres):
    """Return (can_fold, dens_thres) with
         1 - exp(-softplus(d + act_shift) * ratio) >= thres  <=>  d >= dens_thres,
       valid whenever voxel_size_ratio > 0 (alpha strictly increasing in d)."""
    ratio = float(voxel_size_ratio)
    th = float(thres)
    shift = float(act_shift)
    if ratio <= 0.0:
        return False, 0.0
    if th <= 0.0:
        return True, float("-inf")   # alpha in (0, 1) -> always >= thres
    if th >= 1.0:
        return True, float("inf")    # alpha < 1       -> never  >= thres
    y = -math.log1p(-th) / ratio                 # need softplus(d + shift) >= y, y > 0
    sp_inv = y + math.log1p(-math.exp(-y))       # inverse softplus = log(expm1(y)), stable
    return True, sp_inv - shift


def mask_cache_forward(xyz, density_grid, xyz_min, xyz_max,
                       act_shift, voxel_size_ratio, thres, *, tile_n=2048):
    """xyz: (..., 3) float32; density_grid: (D, H, W) float32 (already max-pooled).

    tile_n: sweepable; ~2048-4096 is reasonable on v5e/v6e, keep ~1024 on v7x (64 MiB VMEM).
    """
    lead_shape = xyz.shape[:-1]
    pts = xyz.reshape(-1, 3).astype(jnp.float32)
    n = pts.shape[0]
    Dg, Hg, Wg = density_grid.shape
    DH = Dg * Hg

    LANE = 128
    tile_n = max(LANE, (int(tile_n) // LANE) * LANE)
    # Don't over-pad tiny calls.
    tile_n = min(tile_n, max(LANE, _cdiv(n, LANE) * LANE))
    if n > LANE:
        # Cap the tile so the point grid has >= 2 steps: the "parallel" axis can then shard
        # across v7x's two TensorCores and the DMA pipeline has something to overlap.
        tile_n = min(tile_n, max(LANE, _cdiv(_cdiv(n, 2), LANE) * LANE))
    n_pad = max(_cdiv(n, tile_n), 1) * tile_n
    if n_pad != n:
        pts = jnp.pad(pts, ((0, n_pad - n), (0, 0)))
    pts_t = pts.T  # (3, n_pad): points on the fast (lane) axis

    # density[d, h, w] -> slab[w, d*Hg + h]: LHS of the MXU contraction.  bf16 halves VMEM
    # residency and feeds the MXU's native bf16 path.
    dens_slab = jnp.transpose(density_grid, (2, 0, 1)).reshape(Wg, DH).astype(jnp.bfloat16)

    inv_ext = 1.0 / (xyz_max - xyz_min)
    fold, dens_thres = _fold_alpha_threshold(act_shift, voxel_size_ratio, thres)
    if fold:
        extra = jnp.array([dens_thres, 0.0, 0.0], dtype=jnp.float32)
    else:
        extra = jnp.array([act_shift, voxel_size_ratio, thres], dtype=jnp.float32)
    params = jnp.concatenate([
        xyz_min.astype(jnp.float32),
        inv_ext.astype(jnp.float32),
        extra,
    ])

    # VMEM budget sized from the actual per-tile footprint (double-buffered ins/outs plus the
    # (DH, TN) bf16 weight intermediate), 2x headroom, capped at v7x's 64 MiB physical VMEM.
    est = (2 * 3 * tile_n * 4            # xyz blocks (x2 buffers)
           + 2 * Wg * DH * 2             # density slab (x2 buffers, constant index_map)
           + 2 * 1 * tile_n * 4          # mask blocks (x2 buffers)
           + DH * tile_n * 2             # w_dh bf16
           + (Dg + Hg) * tile_n * 6      # w_d / w_h (f32 + bf16 copies)
           + 2 * Wg * tile_n * 4         # w_w, t
           + 16 * tile_n * 4)            # positions / mask / slack
    vmem_limit = int(min(64 * 1024 * 1024, max(16 * 1024 * 1024, 2 * est)))

    kernel = functools.partial(_mask_cache_kernel, Dg=Dg, Hg=Hg, Wg=Wg,
                               fold_threshold=fold)
    out = pl.pallas_call(
        kernel,
        out_shape=jax.ShapeDtypeStruct((1, n_pad), jnp.int32),
        grid=(n_pad // tile_n,),
        in_specs=[
            pl.BlockSpec(memory_space=pltpu.MemorySpace.SMEM),   # params (scalars)
            pl.BlockSpec((3, tile_n), lambda i: (0, i)),          # xyz tile, lane-dense
            pl.BlockSpec((Wg, DH), lambda i: (0, 0)),             # density slab (resident)
        ],
        out_specs=pl.BlockSpec((1, tile_n), lambda i: (0, i)),    # lane-dense mask row
        compiler_params=pltpu.CompilerParams(
            dimension_semantics=("parallel",),        # shard point tiles across TCs on v7x
            vmem_limit_bytes=vmem_limit,
        ),
    )(params, pts_t, dens_slab)

    mask = out[0, :n].astype(jnp.bool_)
    return mask.reshape(lead_shape)


def mask_cache_reference(xyz, density_grid, xyz_min, xyz_max,
                         act_shift, voxel_size_ratio, thres):
    """Pure-JAX f32 reference (trilinear grid_sample, zeros padding, align_corners=True)."""
    Dg, Hg, Wg = density_grid.shape
    pts = xyz.reshape(-1, 3).astype(jnp.float32)
    t = (pts - xyz_min) / (xyz_max - xyz_min)
    pd = t[:, 0] * (Dg - 1)
    ph = t[:, 1] * (Hg - 1)
    pw = t[:, 2] * (Wg - 1)
    d0f = jnp.floor(pd); h0f = jnp.floor(ph); w0f = jnp.floor(pw)
    fd = pd - d0f; fh = ph - h0f; fw = pw - w0f
    d0 = d0f.astype(jnp.int32); h0 = h0f.astype(jnp.int32); w0 = w0f.astype(jnp.int32)
    dens = jnp.zeros(pts.shape[0], jnp.float32)
    for dd in (0, 1):
        for hh in (0, 1):
            for ww in (0, 1):
                di, hi, wi = d0 + dd, h0 + hh, w0 + ww
                wgt = ((fd if dd else 1.0 - fd)
                       * (fh if hh else 1.0 - fh)
                       * (fw if ww else 1.0 - fw))
                inb = ((di >= 0) & (di < Dg) & (hi >= 0) & (hi < Hg)
                       & (wi >= 0) & (wi < Wg))
                val = density_grid[jnp.clip(di, 0, Dg - 1),
                                   jnp.clip(hi, 0, Hg - 1),
                                   jnp.clip(wi, 0, Wg - 1)]
                dens = dens + jnp.where(inb, wgt * val, 0.0)
    alpha = 1.0 - jnp.exp(-jax.nn.softplus(dens + act_shift) * voxel_size_ratio)
    return dens.reshape(xyz.shape[:-1]), (alpha >= thres).reshape(xyz.shape[:-1])


if __name__ == "__main__":
    key = jax.random.PRNGKey(0)
    k_dens, k_pts = jax.random.split(key)

    # Synthetic "checkpoint": raw density voxel grid (1, 1, D, H, W), then the
    # init-time max_pool3d(kernel=3, stride=1, padding=1).
    Dg = Hg = Wg = 16
    raw_density = jax.random.normal(k_dens, (1, 1, Dg, Hg, Wg), dtype=jnp.float32)
    pooled = jax.lax.reduce_window(
        raw_density, -jnp.inf, jax.lax.max,
        window_dimensions=(1, 1, 3, 3, 3),
        window_strides=(1, 1, 1, 1, 1),
        padding=((0, 0), (0, 0), (1, 1), (1, 1), (1, 1)),
    )
    density_grid = pooled[0, 0]  # (D, H, W)

    xyz_min = jnp.array([-1.0, -1.0, -1.0], dtype=jnp.float32)
    xyz_max = jnp.array([1.0, 1.0, 1.0], dtype=jnp.float32)
    act_shift = -1.0
    voxel_size_ratio = 0.5
    mask_cache_thres = 0.2

    # Query points, some outside the bbox to exercise the zeros-padding path.
    xyz = jax.random.uniform(k_pts, (2, 256, 3), dtype=jnp.float32,
                             minval=-1.2, maxval=1.2)

    mask = mask_cache_forward(xyz, density_grid, xyz_min, xyz_max,
                              act_shift, voxel_size_ratio, mask_cache_thres)
    mask = jax.block_until_ready(mask)
    assert mask.shape == (2, 256) and mask.dtype == jnp.bool_

    # Check against the pure-JAX f32 reference; disagreements are only tolerated for points
    # whose reference density sits within a small bf16-MXU error band of the folded threshold.
    dens_ref, mask_ref = mask_cache_reference(
        xyz, density_grid, xyz_min, xyz_max,
        act_shift, voxel_size_ratio, mask_cache_thres)
    _, dens_thres = _fold_alpha_threshold(act_shift, voxel_size_ratio,
                                          mask_cache_thres)
    near_boundary = jnp.abs(dens_ref - dens_thres) < 0.25
    assert bool(jnp.all((mask == mask_ref) | near_boundary)), \
        "mask mismatch vs pure-JAX reference"

    print("KERNEL_OK")
</pallas_src>

<mosaic_0001>
module attributes {stable_mosaic.version = 11 : i64} {
  func.func @_mask_cache_kernel(%arg0: i32, %arg1: memref<9xf32, #tpu.memory_space<smem>>, %arg2: memref<3x256xf32, #tpu.memory_space<vmem>>, %arg3: memref<16x256xbf16, #tpu.memory_space<vmem>>, %arg4: memref<1x256xi32, #tpu.memory_space<vmem>>) attributes {dimension_semantics = [#tpu.dimension_semantics<parallel>], iteration_bounds = array<i64: 2>, scalar_prefetch = 0 : i64, scratch_operands = 0 : i64, tpu.core_type = #tpu.core_type<tc>, window_params = [{transform_indices = @transform_0, window_bounds = array<i64: 9>}, {transform_indices = @transform_1, window_bounds = array<i64: 3, 256>}, {pipeline_mode = #tpu.pipeline_mode<synchronous>, transform_indices = @transform_2, window_bounds = array<i64: 16, 256>}, {transform_indices = @transform_3, window_bounds = array<i64: 1, 256>}]} {
    %c0 = arith.constant 0 : index
    %c0_0 = arith.constant 0 : index
    %0 = vector.load %arg2[%c0, %c0_0] : memref<3x256xf32, #tpu.memory_space<vmem>>, vector<1x256xf32>
    %c1 = arith.constant 1 : index
    %c0_1 = arith.constant 0 : index
    %1 = vector.load %arg2[%c1, %c0_1] : memref<3x256xf32, #tpu.memory_space<vmem>>, vector<1x256xf32>
    %c2 = arith.constant 2 : index
    %c0_2 = arith.constant 0 : index
    %2 = vector.load %arg2[%c2, %c0_2] : memref<3x256xf32, #tpu.memory_space<vmem>>, vector<1x256xf32>
    %c0_3 = arith.constant 0 : index
    %3 = memref.load %arg1[%c0_3] : memref<9xf32, #tpu.memory_space<smem>>
    %4 = vector.broadcast %3 : f32 to vector<1x256xf32>
    %5 = arith.subf %0, %4 : vector<1x256xf32>
    %c3 = arith.constant 3 : index
    %6 = memref.load %arg1[%c3] : memref<9xf32, #tpu.memory_space<smem>>
    %7 = vector.broadcast %6 : f32 to vector<1x256xf32>
    %8 = arith.mulf %5, %7 : vector<1x256xf32>
    %cst = arith.constant 1.500000e+01 : f32
    %9 = vector.broadcast %cst : f32 to vector<1x256xf32>
    %10 = arith.mulf %8, %9 : vector<1x256xf32>
    %c1_4 = arith.constant 1 : index
    %11 = memref.load %arg1[%c1_4] : memref<9xf32, #tpu.memory_space<smem>>
    %12 = vector.broadcast %11 : f32 to vector<1x256xf32>
    %13 = arith.subf %1, %12 : vector<1x256xf32>
    %c4 = arith.constant 4 : index
    %14 = memref.load %arg1[%c4] : memref<9xf32, #tpu.memory_space<smem>>
    %15 = vector.broadcast %14 : f32 to vector<1x256xf32>
    %16 = arith.mulf %13, %15 : vector<1x256xf32>
    %cst_5 = arith.constant 1.500000e+01 : f32
    %17 = vector.broadcast %cst_5 : f32 to vector<1x256xf32>
    %18 = arith.mulf %16, %17 : vector<1x256xf32>
    %c2_6 = arith.constant 2 : index
    %19 = memref.load %arg1[%c2_6] : memref<9xf32, #tpu.memory_space<smem>>
    %20 = vector.broadcast %19 : f32 to vector<1x256xf32>
    %21 = arith.subf %2, %20 : vector<1x256xf32>
    %c5 = arith.constant 5 : index
    %22 = memref.load %arg1[%c5] : memref<9xf32, #tpu.memory_space<smem>>
    %23 = vector.broadcast %22 : f32 to vector<1x256xf32>
    %24 = arith.mulf %21, %23 : vector<1x256xf32>
    %cst_7 = arith.constant 1.500000e+01 : f32
    %25 = vector.broadcast %cst_7 : f32 to vector<1x256xf32>
    %26 = arith.mulf %24, %25 : vector<1x256xf32>
    %27 = tpu.iota {dimensions = array<i32: 0>} : vector<16x256xi32>
    %28 = arith.sitofp %27 : vector<16x256xi32> to vector<16x256xf32>
    %29 = vector.broadcast %10 : vector<1x256xf32> to vector<16x256xf32>
    %30 = arith.subf %29, %28 : vector<16x256xf32>
    %31 = math.absf %30 : vector<16x256xf32>
    %cst_8 = arith.constant 1.000000e+00 : f32
    %32 = vector.broadcast %cst_8 : f32 to vector<16x256xf32>
    %33 = arith.subf %32, %31 : vector<16x256xf32>
    %cst_9 = arith.constant 0.000000e+00 : f32
    %34 = vector.broadcast %cst_9 : f32 to vector<16x256xf32>
    %35 = arith.maximumf %34, %33 : vector<16x256xf32>
    %36 = arith.truncf %35 : vector<16x256xf32> to vector<16x256xbf16>
    %37 = tpu.iota {dimensions = array<i32: 0>} : vector<16x256xi32>
    %38 = arith.sitofp %37 : vector<16x256xi32> to vector<16x256xf32>
    %39 = vector.broadcast %18 : vector<1x256xf32> to vector<16x256xf32>
    %40 = arith.subf %39, %38 : vector<16x256xf32>
    %41 = math.absf %40 : vector<16x256xf32>
    %cst_10 = arith.constant 1.000000e+00 : f32
    %42 = vector.broadcast %cst_10 : f32 to vector<16x256xf32>
    %43 = arith.subf %42, %41 : vector<16x256xf32>
    %cst_11 = arith.constant 0.000000e+00 : f32
    %44 = vector.broadcast %cst_11 : f32 to vector<16x256xf32>
    %45 = arith.maximumf %44, %43 : vector<16x256xf32>
    %46 = arith.truncf %45 : vector<16x256xf32> to vector<16x256xbf16>
    %47 = tpu.iota {dimensions = array<i32: 0>} : vector<16x256xi32>
    %48 = arith.sitofp %47 : vector<16x256xi32> to vector<16x256xf32>
    %49 = vector.broadcast %26 : vector<1x256xf32> to vector<16x256xf32>
    %50 = arith.subf %49, %48 : vector<16x256xf32>
    %51 = math.absf %50 : vector<16x256xf32>
    %cst_12 = arith.constant 1.000000e+00 : f32
    %52 = vector.broadcast %cst_12 : f32 to vector<16x256xf32>
    %53 = arith.subf %52, %51 : vector<16x256xf32>
    %cst_13 = arith.constant 0.000000e+00 : f32
    %54 = vector.broadcast %cst_13 : f32 to vector<16x256xf32>
    %55 = arith.maximumf %54, %53 : vector<16x256xf32>
    %56 = vector.shape_cast %36 : vector<16x256xbf16> to vector<16x1x256xbf16>
    %57 = vector.shape_cast %46 : vector<16x256xbf16> to vector<1x16x256xbf16>
    %58 = vector.broadcast %56 : vector<16x1x256xbf16> to vector<16x16x256xbf16>
    %59 = vector.broadcast %57 : vector<1x16x256xbf16> to vector<16x16x256xbf16>
    %60 = arith.mulf %58, %59 : vector<16x16x256xbf16>
    %61 = vector.shape_cast %60 : vector<16x16x256xbf16> to vector<256x256xbf16>
    %c0_14 = arith.constant 0 : index
    %c0_15 = arith.constant 0 : index
    %62 = vector.load %arg3[%c0_14, %c0_15] : memref<16x256xbf16, #tpu.memory_space<vmem>>, vector<16x256xbf16>
    %cst_16 = arith.constant dense<0.000000e+00> : vector<16x256xf32>
    %63 = tpu.matmul %62, %61, %cst_16 {dimension_numbers = #tpu.dot_dimension_numbers<[1], [0], [0], [1], [0, 0, 1, 1], [], []>} : vector<16x256xbf16>, vector<256x256xbf16>, vector<16x256xf32> -> vector<16x256xf32>
    %64 = arith.mulf %55, %63 : vector<16x256xf32>
    %cst_17 = arith.constant dense<0.000000e+00> : vector<256xf32>
    %65 = vector.multi_reduction <add>, %64, %cst_17 [0] : vector<16x256xf32> to vector<256xf32>
    %66 = vector.shape_cast %65 : vector<256xf32> to vector<1x256xf32>
    %c6 = arith.constant 6 : index
    %67 = memref.load %arg1[%c6] : memref<9xf32, #tpu.memory_space<smem>>
    %68 = vector.broadcast %67 : f32 to vector<1x256xf32>
    %69 = arith.cmpf oge, %66, %68 : vector<1x256xf32>
    %70 = arith.extui %69 : vector<1x256xi1> to vector<1x256xi32>
    %c0_18 = arith.constant 0 : index
    %c0_19 = arith.constant 0 : index
    %71 = vector.load %arg4[%c0_18, %c0_19] : memref<1x256xi32, #tpu.memory_space<vmem>>, vector<1x256xi32>
    tpu.vector_store %arg4[%c0_18, %c0_19], %70 {strides = array<i32>} : memref<1x256xi32, #tpu.memory_space<vmem>>, vector<1x256xi32>,
    return
  }
  func.func @transform_0(%arg0: i32) -> i32 {
    %c0_i32 = arith.constant 0 : i32
    %c0_i32_0 = arith.constant 0 : i32
    return %c0_i32 : i32
  }
  func.func @transform_1(%arg0: i32) -> (i32, i32) {
    %c0_i32 = arith.constant 0 : i32
    %c0_i32_0 = arith.constant 0 : i32
    return %c0_i32, %arg0 : i32, i32
  }
  func.func @transform_2(%arg0: i32) -> (i32, i32) {
    %c0_i32 = arith.constant 0 : i32
    %c0_i32_0 = arith.constant 0 : i32
    %c0_i32_1 = arith.constant 0 : i32
    return %c0_i32, %c0_i32_0 : i32, i32
  }
  func.func @transform_3(%arg0: i32) -> (i32, i32) {
    %c0_i32 = arith.constant 0 : i32
    %c0_i32_0 = arith.constant 0 : i32
    return %c0_i32, %arg0 : i32, i32
  }
}

</mosaic_0001>

<llo_original>
// kernel: tpu_custom_call.1
$region0: #{tpu_custom_call.1}
  #allocation0 [shape = 'u32[]', space=smem, size = 0x4, offset = 0x4, fixed_abs, tag = 'smem constant byte address 0x4 - core index']
  #allocation1 [shape = 'u32[144,128]{1,0:T(1,128)}', space=vmem, size = 0x12000, scoped, tag = 'internal scratch']
  %s0 = inlined_call_operand.hbm [shape: f32[9], index: 0, kind: input, shape index: {}]
  %s1 = inlined_call_operand.hbm [shape: f32[3,512], index: 1, kind: input, shape index: {}]
  %s2 = inlined_call_operand.hbm [shape: bf16[16,256], index: 2, kind: input, shape index: {}]
  %s3 = inlined_call_operand.hbm [shape: s32[1,512], index: 3, kind: output, shape index: {}]
  %s4 = sld [smem:[#allocation0]]
  $region57: #{tpu_custom_call.1} parent=0
    _
  %s6 = ssub.s32 1, %s4
  %s7 = scalar_select 0, %s6, %s4
  $region1: #{tpu_custom_call.1} parent=0
    #allocation2 [shape = 'u8[512]{0}', space=smem, size = 0x200, scoped, tag = 'input window, operand 0, single buffered']
    #allocation3 [shape = 's32[2]{0}', space=sflag, size = 0x8, scoped, tag = 'scoped memory for tpu_custom_call.1']
    #allocation4 [shape = 's32[2]{0}', space=sflag, size = 0x8, scoped, tag = 'scoped memory for tpu_custom_call.1']
    #allocation5 [shape = 's32[2]{0}', space=sflag, size = 0x8, scoped, tag = 'scoped memory for tpu_custom_call.1']
    #allocation6 [shape = 'u8[8192]{0}', space=vmem, size = 0x2000, scoped, tag = 'input window, operand 1']
    #allocation7 [shape = 'u8[8192]{0}', space=vmem, size = 0x2000, scoped, tag = 'input window, operand 2, single buffered']
    #allocation8 [shape = 's32[1]{0}', space=sflag, size = 0x4, scoped, tag = 'scoped memory for tpu_custom_call.1']
    #allocation9 [shape = 'u8[2048]{0}', space=vmem, size = 0x800, scoped, tag = 'output window, operand 0']
    %8 = vsyncpa [#allocation5], 0
    %9 = vsyncpa [#allocation3], 0
    %s10 = scalar_lea.sflag [#allocation3], 1
    %11 = vsyncpa %s10, 0
    %12 = vsyncpa [#allocation8], 0
    %13 = vsyncpa [#allocation4], 0
    %s14 = scalar_lea.sflag [#allocation4], 1
    %15 = vsyncpa %s14, 0
    loop: start=0, step=1, limit=4
    $region2: #{tpu_custom_call.1} parent=1 // loop_pre_header
      _
    $region3: #{tpu_custom_call.1} parent=1 // loop_header
      %s17 = sphi 0, %s21
      %p18 = scmp.ge.s32.totalorder %s17, 4
      %s25 = sphi 0, %s25
      %s27 = sphi 0, %s25
      %s28 = sphi 0, %s27
      %s42 = sphi 0, %s28
      %s48 = sphi 0, %s50
      %s51 = sphi 0, %s48
      %s52 = sphi 0, %s51
      %s68 = sphi 0, %s52
      %s72 = sphi 0, %s72
      %s74 = sphi 0, %s72
      %s75 = sphi 0, %s74
      %s89 = sphi 0, %s75
      %s95 = sphi 0, %s97
      %s98 = sphi 0, %s95
      %s99 = sphi 0, %s98
      %s115 = sphi 0, %s99
    $region4: #{tpu_custom_call.1} parent=1 // loop_header_branch
      %20 = sbr.rel (%p18) target = $region8
    $region5: #{tpu_custom_call.1} parent=1 // loop_body
      %s22 = ssub.s32 %s17, 1
      %s23 = ssub.s32 %s17, 2
      %s24 = sadd.s32 %s17, 1
      %s26 = sadd.s32 %s25, 1
      %p29 = scmp.eq.s32.totalorder %s17, 1
      %p30 = scmp.ne.s32.totalorder %s25, %s27
      %p31 = scmp.eq.s32.totalorder %s17, 0
      %p32 = por %p30, %p31
      %p33 = scmp.ne.s32.totalorder %s25, %s27
      %p34 = scmp.eq.s32.totalorder %s22, 1
      %p35 = por %p33, %p34
      %p36 = scmp.ne.s32.totalorder %s27, %s28
      %p37 = scmp.eq.s32.totalorder %s22, 0
      %p38 = por %p36, %p37
      %p39 = scmp.ne.s32.totalorder %s27, %s28
      %p40 = scmp.eq.s32.totalorder %s23, 1
      %p41 = por %p39, %p40
      %p43 = scmp.ne.s32.totalorder %s28, %s42
      %p44 = scmp.eq.s32.totalorder %s23, 0
      %p45 = por %p43, %p44
      %s46 = ssub.s32 %s17, %s24
      %p47 = scmp.eq.s32.totalorder %s46, 0
      %s49 = sadd.s32 %s48, 1
      %s50 = scalar_select %p47, %s48, %s49
      %p53 = pneg %p47
      %p54 = scmp.eq.s32.totalorder %s17, 1
      %p55 = por %p53, %p54
      %p56 = scmp.ne.s32.totalorder %s48, %s51
      %p57 = scmp.eq.s32.totalorder %s17, 0
      %p58 = por %p56, %p57
      %p59 = scmp.ne.s32.totalorder %s48, %s51
      %p60 = scmp.eq.s32.totalorder %s22, 1
      %p61 = por %p59, %p60
      %p62 = scmp.ne.s32.totalorder %s51, %s52
      %p63 = scmp.eq.s32.totalorder %s22, 0
      %p64 = por %p62, %p63
      %p65 = scmp.ne.s32.totalorder %s51, %s52
      %p66 = scmp.eq.s32.totalorder %s23, 1
      %p67 = por %p65, %p66
      %p69 = scmp.ne.s32.totalorder %s52, %s68
      %p70 = scmp.eq.s32.totalorder %s23, 0
      %p71 = por %p69, %p70
      %s73 = sadd.s32 %s72, 1
      %p76 = scmp.eq.s32.totalorder %s17, 1
      %p77 = scmp.ne.s32.totalorder %s72, %s74
      %p78 = scmp.eq.s32.totalorder %s17, 0
      %p79 = por %p77, %p78
      %p80 = scmp.ne.s32.totalorder %s72, %s74
      %p81 = scmp.eq.s32.totalorder %s22, 1
      %p82 = por %p80, %p81
      %p83 = scmp.ne.s32.totalorder %s74, %s75
      %p84 = scmp.eq.s32.totalorder %s22, 0
      %p85 = por %p83, %p84
      %p86 = scmp.ne.s32.totalorder %s74, %s75
      %p87 = scmp.eq.s32.totalorder %s23, 1
      %p88 = por %p86, %p87
      %p90 = scmp.ne.s32.totalorder %s75, %s89
      %p91 = scmp.eq.s32.totalorder %s23, 0
      %p92 = por %p90, %p91
      %s93 = ssub.s32 %s17, %s24
      %p94 = scmp.eq.s32.totalorder %s93, 0
      %s96 = sadd.s32 %s95, 1
      %s97 = scalar_select %p94, %s95, %s96
      %p100 = pneg %p94
      %p101 = scmp.eq.s32.totalorder %s17, 1
      %p102 = por %p100, %p101
      %p103 = scmp.ne.s32.totalorder %s95, %s98
      %p104 = scmp.eq.s32.totalorder %s17, 0
      %p105 = por %p103, %p104
      %p106 = scmp.ne.s32.totalorder %s95, %s98
      %p107 = scmp.eq.s32.totalorder %s22, 1
      %p108 = por %p106, %p107
      %p109 = scmp.ne.s32.totalorder %s98, %s99
      %p110 = scmp.eq.s32.totalorder %s22, 0
      %p111 = por %p109, %p110
      %p112 = scmp.ne.s32.totalorder %s98, %s99
      %p113 = scmp.eq.s32.totalorder %s23, 1
      %p114 = por %p112, %p113
      %p116 = scmp.ne.s32.totalorder %s99, %s115
      %p117 = scmp.eq.s32.totalorder %s23, 0
      %p118 = por %p116, %p117
      %p119 = scmp.le.s32.totalorder 1, %s17
      %p120 = scmp.lt.s32.totalorder %s17, 3
      %p121 = pnand %p119, %p120
      %p122 = pneg %p121
      // Predicated region
      $region9: #{tpu_custom_call.1} parent=5 // pred_check
        _
      $region10: #{tpu_custom_call.1} parent=5 // pred_check_branch
        %124 = sbr.rel (%p121) target = $region12
      $region11: #{tpu_custom_call.1} parent=5 // pred_region
        %s125 = ssub.s32 %s17, 1
        // Predicated region
        $region13: #{tpu_custom_call.1} parent=11 // pred_check
          %p126 = pneg %p38
        $region14: #{tpu_custom_call.1} parent=11 // pred_check_branch
          %128 = sbr.rel (%p126) target = $region16
        $region15: #{tpu_custom_call.1} parent=11 // pred_region
          %s130 = ssub.s32 16, 16
          %131 = vsyncadd [#allocation5], %s130
          %134 = dma.hbm_to_smem %s0, 16, [#allocation2], [#allocation5]
        $region16: #{tpu_custom_call.1} parent=11 // pred_fallthru
          _
        // Predicated region
        $region17: #{tpu_custom_call.1} parent=11 // pred_check
          %p135 = pneg %p85
        $region18: #{tpu_custom_call.1} parent=11 // pred_check_branch
          %137 = sbr.rel (%p135) target = $region20
        $region19: #{tpu_custom_call.1} parent=11 // pred_region
          %s139 = ssub.s32 256, 256
          %140 = vsyncadd [#allocation8], %s139
          %s141 = sshll.u32 [#allocation7], 4
          %s142 = int_to_ptr.vmem [resolvable:$true] %s141
          %147 = dma.hbm_to_vmem [thread:$0]  %s2, 256, %s142, [#allocation8], 128, 128, 8
        $region20: #{tpu_custom_call.1} parent=11 // pred_fallthru
          _
      $region12: #{tpu_custom_call.1} parent=5 // pred_fallthru
        _
      %p148 = scmp.lt.s32.totalorder %s17, 2
      // Predicated region
      $region21: #{tpu_custom_call.1} parent=5 // pred_check
        %p149 = pneg %p148
      $region22: #{tpu_custom_call.1} parent=5 // pred_check_branch
        %151 = sbr.rel (%p149) target = $region24
      $region23: #{tpu_custom_call.1} parent=5 // pred_region
        // Predicated region
        $region25: #{tpu_custom_call.1} parent=23 // pred_check
          %p152 = pneg %p58
        $region26: #{tpu_custom_call.1} parent=23 // pred_check_branch
          %154 = sbr.rel (%p152) target = $region28
        $region27: #{tpu_custom_call.1} parent=23 // pred_region
          %s155 = sand.u32 %s48, 1
          %s156 = scalar_lea.sflag [#allocation3], %s155
          %s157 = sand.u32 %s48, 1
          %s158 = smul.addr %s157, 8
          %s159 = scalar_lea.vmem [#allocation6], %s158
          %s160 = smul.u32 2, %s17
          %s162 = ssub.s32 128, 128
          %163 = vsyncadd %s156, %s162
          %s164 = smul.addr %s160, 64
          %s165 = scalar_lea.hbm %s1, %s164
          %s167 = sshll.u32 %s159, 4
          %s168 = int_to_ptr.vmem [resolvable:$true] %s167
          %170 = dma.hbm_to_vmem [thread:$0]  %s165, 128, %s168, %s156
        $region28: #{tpu_custom_call.1} parent=23 // pred_fallthru
          _
      $region24: #{tpu_custom_call.1} parent=5 // pred_fallthru
        _
      %p171 = scmp.le.s32.totalorder 1, %s17
      %p172 = scmp.lt.s32.totalorder %s17, 3
      %p173 = pnand %p171, %p172
      %p174 = pneg %p173
      // Predicated region
      $region29: #{tpu_custom_call.1} parent=5 // pred_check
        _
      $region30: #{tpu_custom_call.1} parent=5 // pred_check_branch
        %176 = sbr.rel (%p173) target = $region32
      $region31: #{tpu_custom_call.1} parent=5 // pred_region
        %s177 = ssub.s32 %s17, 1
        // Predicated region
        $region33: #{tpu_custom_call.1} parent=31 // pred_check
          %p178 = pneg %p38
        $region34: #{tpu_custom_call.1} parent=31 // pred_check_branch
          %180 = sbr.rel (%p178) target = $region36
        $region35: #{tpu_custom_call.1} parent=31 // pred_region
          %181 = dma.done [#allocation5], 16
        $region36: #{tpu_custom_call.1} parent=31 // pred_fallthru
          _
        %s182 = sand.u32 %s51, 1
        %s183 = scalar_lea.sflag [#allocation3], %s182
        %s184 = sand.u32 %s51, 1
        %s185 = smul.addr %s184, 8
        %s186 = scalar_lea.vmem [#allocation6], %s185
        // Predicated region
        $region37: #{tpu_custom_call.1} parent=31 // pred_check
          %p187 = pneg %p64
        $region38: #{tpu_custom_call.1} parent=31 // pred_check_branch
          %189 = sbr.rel (%p187) target = $region40
        $region39: #{tpu_custom_call.1} parent=31 // pred_region
          %190 = dma.done %s183, 128
        $region40: #{tpu_custom_call.1} parent=31 // pred_fallthru
          _
        // Predicated region
        $region41: #{tpu_custom_call.1} parent=31 // pred_check
          %p191 = pneg %p85
        $region42: #{tpu_custom_call.1} parent=31 // pred_check_branch
          %193 = sbr.rel (%p191) target = $region44
        $region43: #{tpu_custom_call.1} parent=31 // pred_region
          %194 = dma.done [#allocation8], 256
        $region44: #{tpu_custom_call.1} parent=31 // pred_fallthru
          _
        %195 = sfence
        %p196 = pneg %p38
        %p197 = pneg %p35
        %s198 = sand.u32 %s51, 1
        %s199 = scalar_lea.sflag [#allocation3], %s198
        %s200 = sand.u32 %s51, 1
        %s201 = smul.addr %s200, 8
        %s202 = scalar_lea.vmem [#allocation6], %s201
        %p203 = pneg %p64
        %p204 = pneg %p61
        %p205 = pneg %p85
        %p206 = pneg %p82
        %p207 = pneg %p111
        %p208 = pneg %p108
        %s209 = sand.u32 %s98, 1
        %s210 = scalar_lea.sflag [#allocation4], %s209
        %s211 = sand.u32 %s98, 1
        %s212 = smul.addr %s211, 2
        %s213 = scalar_lea.vmem [#allocation9], %s212
        %s214 = smul.u32 2, %s22
        %s215 = smul.u32 2, %s22
        %v216 = vld [vmem:[%s186] ss:$4 sm:$0x3]
        %s217 = scalar_lea.vmem %s186, 1 [#allocation6]
        %v218 = vld [vmem:[%s217] ss:$4 sm:$0x3]
        %s219 = scalar_lea.vmem %s186, 2 [#allocation6]
        %v220 = vld [vmem:[%s219] ss:$4 sm:$0x3]
        %s221 = sld [smem:[#allocation2]]
        %v222 = vstv %s221
        %v223 = vsub.f32 %v216, %v222
        %s224 = sld [smem:[#allocation2 + $0x3]]
        %v225 = vstv %s224
        %v226 = vmul.f32 %v223, %v225
        %v227 = vmul.f32 %v226, 15.0
        %s228 = sld [smem:[#allocation2 + $0x1]]
        %v229 = vstv %s228
        %v230 = vsub.f32 %v218, %v229
        %s231 = sld [smem:[#allocation2 + $0x4]]
        %v232 = vstv %s231
        %v233 = vmul.f32 %v230, %v232
        %v234 = vmul.f32 %v233, 15.0
        %s235 = sld [smem:[#allocation2 + $0x2]]
        %v236 = vstv %s235
        %v237 = vsub.f32 %v220, %v236
        %s238 = sld [smem:[#allocation2 + $0x5]]
        %v239 = vstv %s238
        %v240 = vmul.f32 %v237, %v239
        %v241 = vmul.f32 %v240, 15.0
        %v242 = vlaneseq
        %v243 = vshrl.u32 %v242, 7
        %v244 = vadd.s32 %v243, 8
        %v245 = vcvt.s32.f32 %v243
        %v246 = vcvt.s32.f32 %v244
        %v248 = vlaneseq
        %v249 = vshrl.u32 %v248, 7
        %v250 = vsub.s32 0, %v249
        %v251 = vrot.slane %v227, %v250
        %v252 = vlaneseq
        %v253 = vshrl.u32 %v252, 7
        %v254 = vsub.s32 1, %v253
        %v255 = vrot.slane %v227, %v254
        %v258 = vsub.f32 %v251, %v245
        %v259 = vsub.f32 %v255, %v245
        %v260 = vsub.f32 %v251, %v246
        %v261 = vsub.f32 %v255, %v246
        %v262 = vand.u32 2147483647, %v258
        %v263 = vand.u32 2147483647, %v259
        %v264 = vand.u32 2147483647, %v260
        %v265 = vand.u32 2147483647, %v261
        %v266 = vsub.f32 1.0, %v262
        %v267 = vsub.f32 1.0, %v263
        %v268 = vsub.f32 1.0, %v264
        %v269 = vsub.f32 1.0, %v265
        %v270 = vmax.f32 %v266, 0.0
        %v271 = vmax.f32 %v267, 0.0
        %v272 = vmax.f32 %v268, 0.0
        %v273 = vmax.f32 %v269, 0.0
        %v274 = vpack.c.bf16 %v272, %v270
        %v275 = vpack.c.bf16 %v273, %v271
        %v277 = vlaneseq
        %v278 = vshrl.u32 %v277, 7
        %v279 = vsub.s32 0, %v278
        %v280 = vrot.slane %v234, %v279
        %v281 = vlaneseq
        %v282 = vshrl.u32 %v281, 7
        %v283 = vsub.s32 1, %v282
        %v284 = vrot.slane %v234, %v283
        %v287 = vsub.f32 %v280, %v245
        %v288 = vsub.f32 %v284, %v245
        %v289 = vsub.f32 %v280, %v246
        %v290 = vsub.f32 %v284, %v246
        %v291 = vand.u32 2147483647, %v287
        %v292 = vand.u32 2147483647, %v288
        %v293 = vand.u32 2147483647, %v289
        %v294 = vand.u32 2147483647, %v290
        %v295 = vsub.f32 1.0, %v291
        %v296 = vsub.f32 1.0, %v292
        %v297 = vsub.f32 1.0, %v293
        %v298 = vsub.f32 1.0, %v294
        %v299 = vmax.f32 %v295, 0.0
        %v300 = vmax.f32 %v296, 0.0
        %v301 = vmax.f32 %v297, 0.0
        %v302 = vmax.f32 %v298, 0.0
        %v303 = vpack.c.bf16 %v301, %v299
        %v304 = vpack.c.bf16 %v302, %v300
        %v306 = vlaneseq
        %v307 = vshrl.u32 %v306, 7
        %v308 = vsub.s32 0, %v307
        %v309 = vrot.slane %v241, %v308
        %v310 = vlaneseq
        %v311 = vshrl.u32 %v310, 7
        %v312 = vsub.s32 1, %v311
        %v313 = vrot.slane %v241, %v312
        %v316 = vsub.f32 %v309, %v245
        %v317 = vsub.f32 %v313, %v245
        %v318 = vsub.f32 %v309, %v246
        %v319 = vsub.f32 %v313, %v246
        %v320 = vand.u32 2147483647, %v316
        %v321 = vand.u32 2147483647, %v317
        %v322 = vand.u32 2147483647, %v318
        %v323 = vand.u32 2147483647, %v319
        %v324 = vsub.f32 1.0, %v320
        %v325 = vsub.f32 1.0, %v321
        %v326 = vsub.f32 1.0, %v322
        %v327 = vsub.f32 1.0, %v323
        %v328 = vmax.f32 %v324, 0.0
        %v329 = vmax.f32 %v325, 0.0
        %v330 = vmax.f32 %v326, 0.0
        %v331 = vmax.f32 %v327, 0.0
        %v334 = vcombine.low %v274, %v275
        %v335 = vcombine.high %v274, %v275
        %v337 = vunpack.c.l.s4 1966171168
        %v338 = vunpack.c.0.s8 %v337
        %v339 = vlaneseq
        %v340 = vshrl.u32 %v339, 7
        %v341 = vsub.s32 %v338, %v340
        %v342 = vrot.slane %v334, %v341
        %v344 = vunpack.c.l.s4 1966171168
        %v345 = vunpack.c.0.s8 %v344
        %v346 = vlaneseq
        %v347 = vshrl.u32 %v346, 7
        %v348 = vsub.s32 %v345, %v347
        %v349 = vrot.slane %v335, %v348
        %v350 = vcombine.high %v342, %v342
        %v351 = vcombine.high %v349, %v349
        %v353 = vunpack.c.l.s4 1966171168
        %v354 = vunpack.c.0.s8 %v353
        %v355 = vlaneseq
        %v356 = vshrl.u32 %v355, 7
        %v357 = vsub.s32 %v354, %v356
        %v358 = vrot.slane %v342, %v357
        %v360 = vunpack.c.l.s4 1966171168
        %v361 = vunpack.c.0.s8 %v360
        %v362 = vlaneseq
        %v363 = vshrl.u32 %v362, 7
        %v364 = vsub.s32 %v361, %v363
        %v365 = vrot.slane %v349, %v364
        %v367 = vunpack.c.l.s4 1966171168
        %v368 = vunpack.c.0.s8 %v367
        %v369 = vlaneseq
        %v370 = vshrl.u32 %v369, 7
        %v371 = vsub.s32 %v368, %v370
        %v372 = vrot.slane %v350, %v371
        %v374 = vunpack.c.l.s4 1966171168
        %v375 = vunpack.c.0.s8 %v374
        %v376 = vlaneseq
        %v377 = vshrl.u32 %v376, 7
        %v378 = vsub.s32 %v375, %v377
        %v379 = vrot.slane %v351, %v378
        %v380 = vcombine.high %v358, %v358
        %v381 = vcombine.high %v365, %v365
        %v382 = vcombine.high %v372, %v372
        %v383 = vcombine.high %v379, %v379
        %v384 = vunpack.i.l.s16 %v358
        %v385 = vunpack.i.h.s16 %v358
        %v386 = vunpack.i.l.s16 %v372
        %v387 = vunpack.i.h.s16 %v372
        %v388 = vunpack.i.l.s16 %v380
        %v389 = vunpack.i.h.s16 %v380
        %v390 = vunpack.i.l.s16 %v382
        %v391 = vunpack.i.h.s16 %v382
        %v392 = vunpack.i.l.s16 %v365
        %v393 = vunpack.i.h.s16 %v365
        %v394 = vunpack.i.l.s16 %v379
        %v395 = vunpack.i.h.s16 %v379
        %v396 = vunpack.i.l.s16 %v381
        %v397 = vunpack.i.h.s16 %v381
        %v398 = vunpack.i.l.s16 %v383
        %v399 = vunpack.i.h.s16 %v383
        %v400 = vpack.i.b16 %v384, %v384
        %v401 = vpack.i.b16 %v385, %v385
        %v402 = vpack.i.b16 %v386, %v386
        %v403 = vpack.i.b16 %v387, %v387
        %v404 = vpack.i.b16 %v388, %v388
        %v405 = vpack.i.b16 %v389, %v389
        %v406 = vpack.i.b16 %v390, %v390
        %v407 = vpack.i.b16 %v391, %v391
        %v408 = vpack.i.b16 %v392, %v392
        %v409 = vpack.i.b16 %v393, %v393
        %v410 = vpack.i.b16 %v394, %v394
        %v411 = vpack.i.b16 %v395, %v395
        %v412 = vpack.i.b16 %v396, %v396
        %v413 = vpack.i.b16 %v397, %v397
        %v414 = vpack.i.b16 %v398, %v398
        %v415 = vpack.i.b16 %v399, %v399
        %v416 = vlaneseq
        %v417 = vshrl.u32 %v416, 7
        %v418 = vsub.s32 0, %v417
        %v419 = vrot.slane %v400, %v418
        %v420 = vlaneseq
        %v421 = vshrl.u32 %v420, 7
        %v422 = vsub.s32 1, %v421
        %v423 = vrot.slane %v400, %v422
        %v424 = vlaneseq
        %v425 = vshrl.u32 %v424, 7
        %v426 = vsub.s32 0, %v425
        %v427 = vrot.slane %v401, %v426
        %v428 = vlaneseq
        %v429 = vshrl.u32 %v428, 7
        %v430 = vsub.s32 1, %v429
        %v431 = vrot.slane %v401, %v430
        %v432 = vlaneseq
        %v433 = vshrl.u32 %v432, 7
        %v434 = vsub.s32 0, %v433
        %v435 = vrot.slane %v402, %v434
        %v436 = vlaneseq
        %v437 = vshrl.u32 %v436, 7
        %v438 = vsub.s32 1, %v437
        %v439 = vrot.slane %v402, %v438
        %v440 = vlaneseq
        %v441 = vshrl.u32 %v440, 7
        %v442 = vsub.s32 0, %v441
        %v443 = vrot.slane %v403, %v442
        %v444 = vlaneseq
        %v445 = vshrl.u32 %v444, 7
        %v446 = vsub.s32 1, %v445
        %v447 = vrot.slane %v403, %v446
        %v448 = vlaneseq
        %v449 = vshrl.u32 %v448, 7
        %v450 = vsub.s32 0, %v449
        %v451 = vrot.slane %v404, %v450
        %v452 = vlaneseq
        %v453 = vshrl.u32 %v452, 7
        %v454 = vsub.s32 1, %v453
        %v455 = vrot.slane %v404, %v454
        %v456 = vlaneseq
        %v457 = vshrl.u32 %v456, 7
        %v458 = vsub.s32 0, %v457
        %v459 = vrot.slane %v405, %v458
        %v460 = vlaneseq
        %v461 = vshrl.u32 %v460, 7
        %v462 = vsub.s32 1, %v461
        %v463 = vrot.slane %v405, %v462
        %v464 = vlaneseq
        %v465 = vshrl.u32 %v464, 7
        %v466 = vsub.s32 0, %v465
        %v467 = vrot.slane %v406, %v466
        %v468 = vlaneseq
        %v469 = vshrl.u32 %v468, 7
        %v470 = vsub.s32 1, %v469
        %v471 = vrot.slane %v406, %v470
        %v472 = vlaneseq
        %v473 = vshrl.u32 %v472, 7
        %v474 = vsub.s32 0, %v473
        %v475 = vrot.slane %v407, %v474
        %v476 = vlaneseq
        %v477 = vshrl.u32 %v476, 7
        %v478 = vsub.s32 1, %v477
        %v479 = vrot.slane %v407, %v478
        %v480 = vlaneseq
        %v481 = vshrl.u32 %v480, 7
        %v482 = vsub.s32 0, %v481
        %v483 = vrot.slane %v408, %v482
        %v484 = vlaneseq
        %v485 = vshrl.u32 %v484, 7
        %v486 = vsub.s32 1, %v485
        %v487 = vrot.slane %v408, %v486
        %v488 = vlaneseq
        %v489 = vshrl.u32 %v488, 7
        %v490 = vsub.s32 0, %v489
        %v491 = vrot.slane %v409, %v490
        %v492 = vlaneseq
        %v493 = vshrl.u32 %v492, 7
        %v494 = vsub.s32 1, %v493
        %v495 = vrot.slane %v409, %v494
        %v496 = vlaneseq
        %v497 = vshrl.u32 %v496, 7
        %v498 = vsub.s32 0, %v497
        %v499 = vrot.slane %v410, %v498
        %v500 = vlaneseq
        %v501 = vshrl.u32 %v500, 7
        %v502 = vsub.s32 1, %v501
        %v503 = vrot.slane %v410, %v502
        %v504 = vlaneseq
        %v505 = vshrl.u32 %v504, 7
        %v506 = vsub.s32 0, %v505
        %v507 = vrot.slane %v411, %v506
        %v508 = vlaneseq
        %v509 = vshrl.u32 %v508, 7
        %v510 = vsub.s32 1, %v509
        %v511 = vrot.slane %v411, %v510
        %v512 = vlaneseq
        %v513 = vshrl.u32 %v512, 7
        %v514 = vsub.s32 0, %v513
        %v515 = vrot.slane %v412, %v514
        %v516 = vlaneseq
        %v517 = vshrl.u32 %v516, 7
        %v518 = vsub.s32 1, %v517
        %v519 = vrot.slane %v412, %v518
        %v520 = vlaneseq
        %v521 = vshrl.u32 %v520, 7
        %v522 = vsub.s32 0, %v521
        %v523 = vrot.slane %v413, %v522
        %v524 = vlaneseq
        %v525 = vshrl.u32 %v524, 7
        %v526 = vsub.s32 1, %v525
        %v527 = vrot.slane %v413, %v526
        %v528 = vlaneseq
        %v529 = vshrl.u32 %v528, 7
        %v530 = vsub.s32 0, %v529
        %v531 = vrot.slane %v414, %v530
        %v532 = vlaneseq
        %v533 = vshrl.u32 %v532, 7
        %v534 = vsub.s32 1, %v533
        %v535 = vrot.slane %v414, %v534
        %v536 = vlaneseq
        %v537 = vshrl.u32 %v536, 7
        %v538 = vsub.s32 0, %v537
        %v539 = vrot.slane %v415, %v538
        %v540 = vlaneseq
        %v541 = vshrl.u32 %v540, 7
        %v542 = vsub.s32 1, %v541
        %v543 = vrot.slane %v415, %v542
        %v545 = vpack.i.b16 %v419, %v419
        %v547 = vlaneseq
        %v548 = vshrl.u32 %v547, 7
        %v549 = vsub.s32 0, %v548
        %v550 = vrot.slane %v545, %v549
        %v552 = vpack.i.b16 %v423, %v423
        %v554 = vlaneseq
        %v555 = vshrl.u32 %v554, 7
        %v556 = vsub.s32 0, %v555
        %v557 = vrot.slane %v552, %v556
        %v559 = vpack.i.b16 %v427, %v427
        %v561 = vlaneseq
        %v562 = vshrl.u32 %v561, 7
        %v563 = vsub.s32 0, %v562
        %v564 = vrot.slane %v559, %v563
        %v566 = vpack.i.b16 %v431, %v431
        %v568 = vlaneseq
        %v569 = vshrl.u32 %v568, 7
        %v570 = vsub.s32 0, %v569
        %v571 = vrot.slane %v566, %v570
        %v573 = vpack.i.b16 %v435, %v435
        %v575 = vlaneseq
        %v576 = vshrl.u32 %v575, 7
        %v577 = vsub.s32 0, %v576
        %v578 = vrot.slane %v573, %v577
        %v580 = vpack.i.b16 %v439, %v439
        %v582 = vlaneseq
        %v583 = vshrl.u32 %v582, 7
        %v584 = vsub.s32 0, %v583
        %v585 = vrot.slane %v580, %v584
        %v587 = vpack.i.b16 %v443, %v443
        %v589 = vlaneseq
        %v590 = vshrl.u32 %v589, 7
        %v591 = vsub.s32 0, %v590
        %v592 = vrot.slane %v587, %v591
        %v594 = vpack.i.b16 %v447, %v447
        %v596 = vlaneseq
        %v597 = vshrl.u32 %v596, 7
        %v598 = vsub.s32 0, %v597
        %v599 = vrot.slane %v594, %v598
        %v601 = vpack.i.b16 %v451, %v451
        %v603 = vlaneseq
        %v604 = vshrl.u32 %v603, 7
        %v605 = vsub.s32 0, %v604
        %v606 = vrot.slane %v601, %v605
        %v608 = vpack.i.b16 %v455, %v455
        %v610 = vlaneseq
        %v611 = vshrl.u32 %v610, 7
        %v612 = vsub.s32 0, %v611
        %v613 = vrot.slane %v608, %v612
        %v615 = vpack.i.b16 %v459, %v459
        %v617 = vlaneseq
        %v618 = vshrl.u32 %v617, 7
        %v619 = vsub.s32 0, %v618
        %v620 = vrot.slane %v615, %v619
        %v622 = vpack.i.b16 %v463, %v463
        %v624 = vlaneseq
        %v625 = vshrl.u32 %v624, 7
        %v626 = vsub.s32 0, %v625
        %v627 = vrot.slane %v622, %v626
        %v629 = vpack.i.b16 %v467, %v467
        %v631 = vlaneseq
        %v632 = vshrl.u32 %v631, 7
        %v633 = vsub.s32 0, %v632
        %v634 = vrot.slane %v629, %v633
        %v636 = vpack.i.b16 %v471, %v471
        %v638 = vlaneseq
        %v639 = vshrl.u32 %v638, 7
        %v640 = vsub.s32 0, %v639
        %v641 = vrot.slane %v636, %v640
        %v643 = vpack.i.b16 %v475, %v475
        %v645 = vlaneseq
        %v646 = vshrl.u32 %v645, 7
        %v647 = vsub.s32 0, %v646
        %v648 = vrot.slane %v643, %v647
        %v650 = vpack.i.b16 %v479, %v479
        %v652 = vlaneseq
        %v653 = vshrl.u32 %v652, 7
        %v654 = vsub.s32 0, %v653
        %v655 = vrot.slane %v650, %v654
        %v657 = vpack.i.b16 %v483, %v483
        %v659 = vlaneseq
        %v660 = vshrl.u32 %v659, 7
        %v661 = vsub.s32 0, %v660
        %v662 = vrot.slane %v657, %v661
        %v664 = vpack.i.b16 %v487, %v487
        %v666 = vlaneseq
        %v667 = vshrl.u32 %v666, 7
        %v668 = vsub.s32 0, %v667
        %v669 = vrot.slane %v664, %v668
        %v671 = vpack.i.b16 %v491, %v491
        %v673 = vlaneseq
        %v674 = vshrl.u32 %v673, 7
        %v675 = vsub.s32 0, %v674
        %v676 = vrot.slane %v671, %v675
        %v678 = vpack.i.b16 %v495, %v495
        %v680 = vlaneseq
        %v681 = vshrl.u32 %v680, 7
        %v682 = vsub.s32 0, %v681
        %v683 = vrot.slane %v678, %v682
        %v685 = vpack.i.b16 %v499, %v499
        %v687 = vlaneseq
        %v688 = vshrl.u32 %v687, 7
        %v689 = vsub.s32 0, %v688
        %v690 = vrot.slane %v685, %v689
        %v692 = vpack.i.b16 %v503, %v503
        %v694 = vlaneseq
        %v695 = vshrl.u32 %v694, 7
        %v696 = vsub.s32 0, %v695
        %v697 = vrot.slane %v692, %v696
        %v699 = vpack.i.b16 %v507, %v507
        %v701 = vlaneseq
        %v702 = vshrl.u32 %v701, 7
        %v703 = vsub.s32 0, %v702
        %v704 = vrot.slane %v699, %v703
        %v706 = vpack.i.b16 %v511, %v511
        %v708 = vlaneseq
        %v709 = vshrl.u32 %v708, 7
        %v710 = vsub.s32 0, %v709
        %v711 = vrot.slane %v706, %v710
        %v713 = vpack.i.b16 %v515, %v515
        %v715 = vlaneseq
        %v716 = vshrl.u32 %v715, 7
        %v717 = vsub.s32 0, %v716
        %v718 = vrot.slane %v713, %v717
        %v720 = vpack.i.b16 %v519, %v519
        %v722 = vlaneseq
        %v723 = vshrl.u32 %v722, 7
        %v724 = vsub.s32 0, %v723
        %v725 = vrot.slane %v720, %v724
        %v727 = vpack.i.b16 %v523, %v523
        %v729 = vlaneseq
        %v730 = vshrl.u32 %v729, 7
        %v731 = vsub.s32 0, %v730
        %v732 = vrot.slane %v727, %v731
        %v734 = vpack.i.b16 %v527, %v527
        %v736 = vlaneseq
        %v737 = vshrl.u32 %v736, 7
        %v738 = vsub.s32 0, %v737
        %v739 = vrot.slane %v734, %v738
        %v741 = vpack.i.b16 %v531, %v531
        %v743 = vlaneseq
        %v744 = vshrl.u32 %v743, 7
        %v745 = vsub.s32 0, %v744
        %v746 = vrot.slane %v741, %v745
        %v748 = vpack.i.b16 %v535, %v535
        %v750 = vlaneseq
        %v751 = vshrl.u32 %v750, 7
        %v752 = vsub.s32 0, %v751
        %v753 = vrot.slane %v748, %v752
        %v755 = vpack.i.b16 %v539, %v539
        %v757 = vlaneseq
        %v758 = vshrl.u32 %v757, 7
        %v759 = vsub.s32 0, %v758
        %v760 = vrot.slane %v755, %v759
        %v762 = vpack.i.b16 %v543, %v543
        %v764 = vlaneseq
        %v765 = vshrl.u32 %v764, 7
        %v766 = vsub.s32 0, %v765
        %v767 = vrot.slane %v762, %v766
        %v768 = vmul.bf16 %v550, %v303
        %v769 = vmul.bf16 %v557, %v304
        %v770 = vmul.bf16 %v564, %v303
        %v771 = vmul.bf16 %v571, %v304
        %v772 = vmul.bf16 %v578, %v303
        %v773 = vmul.bf16 %v585, %v304
        %v774 = vmul.bf16 %v592, %v303
        %v775 = vmul.bf16 %v599, %v304
        %v776 = vmul.bf16 %v606, %v303
        %v777 = vmul.bf16 %v613, %v304
        %v778 = vmul.bf16 %v620, %v303
        %v779 = vmul.bf16 %v627, %v304
        %v780 = vmul.bf16 %v634, %v303
        %v781 = vmul.bf16 %v641, %v304
        %v782 = vmul.bf16 %v648, %v303
        %v783 = vmul.bf16 %v655, %v304
        %v784 = vmul.bf16 %v662, %v303
        %v785 = vmul.bf16 %v669, %v304
        %v786 = vmul.bf16 %v676, %v303
        %v787 = vmul.bf16 %v683, %v304
        %v788 = vmul.bf16 %v690, %v303
        %v789 = vmul.bf16 %v697, %v304
        %v790 = vmul.bf16 %v704, %v303
        %v791 = vmul.bf16 %v711, %v304
        %v792 = vmul.bf16 %v718, %v303
        %v793 = vmul.bf16 %v725, %v304
        %v794 = vmul.bf16 %v732, %v303
        %v795 = vmul.bf16 %v739, %v304
        %v796 = vmul.bf16 %v746, %v303
        %v797 = vmul.bf16 %v753, %v304
        %v798 = vmul.bf16 %v760, %v303
        %v799 = vmul.bf16 %v767, %v304
        %v800 = vld [vmem:[#allocation7] sm:$0xff]
        %v801 = vld [vmem:[#allocation7 + $0x8] sm:$0xff]
        %v804 = vunpack.c.l.b16 %v800
        %v805 = vunpack.c.h.b16 %v800
        %v806 = vunpack.c.l.b16 %v801
        %v807 = vunpack.c.h.b16 %v801
        %v808 = vpack.c.b16 %v806, %v804
        %v809 = vpack.c.b16 %v807, %v805
        %812 = vmatprep.subr.bf16.mxu0 %v769
        %813 = vmatpush1.bf16.msra.mxu0 %v768
        %814 = vmatprep.subr.bf16.mxu0 %v771
        %815 = vmatpush1.bf16.msra.mxu0 %v770
        %816 = vmatprep.subr.bf16.mxu0 %v773
        %817 = vmatpush1.bf16.msra.mxu0 %v772
        %818 = vmatprep.subr.bf16.mxu0 %v775
        %819 = vmatpush1.bf16.msra.mxu0 %v774
        %820 = vmatprep.subr.bf16.mxu0 %v777
        %821 = vmatpush1.bf16.msra.mxu0 %v776
        %822 = vmatprep.subr.bf16.mxu0 %v779
        %823 = vmatpush1.bf16.msra.mxu0 %v778
        %824 = vmatprep.subr.bf16.mxu0 %v781
        %825 = vmatpush1.bf16.msra.mxu0 %v780
        %826 = vmatprep.subr.bf16.mxu0 %v783
        %827 = vmatpush1.bf16.msra.mxu0 %v782
        %828 = vmatprep.subr.bf16.mxu0 %v785
        %829 = vmatpush1.bf16.msra.mxu0 %v784
        %830 = vmatprep.subr.bf16.mxu0 %v787
        %831 = vmatpush1.bf16.msra.mxu0 %v786
        %832 = vmatprep.subr.bf16.mxu0 %v789
        %833 = vmatpush1.bf16.msra.mxu0 %v788
        %834 = vmatprep.subr.bf16.mxu0 %v791
        %835 = vmatpush1.bf16.msra.mxu0 %v790
        %836 = vmatprep.subr.bf16.mxu0 %v793
        %837 = vmatpush1.bf16.msra.mxu0 %v792
        %838 = vmatprep.subr.bf16.mxu0 %v795
        %839 = vmatpush1.bf16.msra.mxu0 %v794
        %840 = vmatprep.subr.bf16.mxu0 %v797
        %841 = vmatpush1.bf16.msra.mxu0 %v796
        %842 = vmatprep.subr.bf16.mxu0 %v799
        %843 = vmatpush1.bf16.msra.mxu0 %v798
        %844 = vmatprep.mubr.bf16.mxu0 %v809
        %845 = vmatmul.mubr.bf16.gmra.mrb[0].mxu0 %v808
        %v846 = vpop.f32.mrb[0].mxu0
        %v847 = vadd.f32 0.0, %v846
        %v848 = vpop.f32.mrb[0].mxu0
        %v849 = vadd.f32 0.0, %v848
        %v850 = vpop.f32.mrb[0].mxu0
        %v851 = vadd.f32 0.0, %v850
        %v852 = vpop.f32.mrb[0].mxu0
        %v853 = vadd.f32 0.0, %v852
        %854 = vdwg.mxu0
        %v855 = vmul.f32 %v328, %v847
        %v856 = vmul.f32 %v329, %v849
        %v857 = vmul.f32 %v330, %v851
        %v858 = vmul.f32 %v331, %v853
        %v859 = vadd.f32 %v855, %v857
        %v860 = vrot.slane %v859, 4
        %v861 = vadd.f32 %v859, %v860
        %v862 = vrot.slane %v861, 2
        %v863 = vadd.f32 %v861, %v862
        %v864 = vrot.slane %v863, 1
        %v865 = vadd.f32 %v863, %v864
        %v866 = vadd.f32 %v856, %v858
        %v867 = vrot.slane %v866, 4
        %v868 = vadd.f32 %v866, %v867
        %v869 = vrot.slane %v868, 2
        %v870 = vadd.f32 %v868, %v869
        %v871 = vrot.slane %v870, 1
        %v872 = vadd.f32 %v870, %v871
        %s873 = sld [smem:[#allocation2 + $0x6]]
        %v874 = vstv %s873
        %vm875 = vcmp.ge.f32.partialorder %v865, %v874
        %vm876 = vcmp.ge.f32.partialorder %v872, %v874
        %v877 = vsel %vm875, 1, 0
        %v878 = vsel %vm876, 1, 0
        %v879 = vcombine.low %v877, %v878
        %v881 = vunpack.c.l.s4 1966171168
        %v882 = vunpack.c.0.s8 %v881
        %v883 = vlaneseq
        %v884 = vshrl.u32 %v883, 7
        %v885 = vsub.s32 %v882, %v884
        %v886 = vrot.slane %v879, %v885
        %v888 = vunpack.c.l.s4 1966171168
        %v889 = vunpack.c.0.s8 %v888
        %v890 = vlaneseq
        %v891 = vshrl.u32 %v890, 7
        %v892 = vsub.s32 %v889, %v891
        %v893 = vrot.slane %v886, %v892
        %v894 = vlaneseq
        %vm895 = vcmp.ge.s32.totalorder %v894, 0
        %vm896 = vcmp.lt.s32.totalorder %v894, 256
        %vm897 = vmand %vm895, %vm896
        %898 = vst.msk [vmem:[%s213] sm:$0x3] %vm897, %v893
        %s899 = sand.u32 %s98, 1
        %s900 = scalar_lea.sflag [#allocation4], %s899
        %s901 = sand.u32 %s98, 1
        %s902 = smul.addr %s901, 2
        %s903 = scalar_lea.vmem [#allocation9], %s902
        // Predicated region
        $region45: #{tpu_custom_call.1} parent=31 // pred_check
          %p904 = pneg %p108
        $region46: #{tpu_custom_call.1} parent=31 // pred_check_branch
          %906 = sbr.rel (%p904) target = $region48
        $region47: #{tpu_custom_call.1} parent=31 // pred_region
          %s907 = smul.u32 2, %s22
          %s909 = ssub.s32 32, 32
          %910 = vsyncadd %s900, %s909
          %s911 = smul.addr %s907, 16
          %s912 = scalar_lea.hbm %s3, %s911
          %s914 = sshll.u32 %s903, 4
          %s915 = int_to_ptr.vmem [resolvable:$true] %s914
          %917 = dma.vmem_to_hbm [thread:$0]  %s915, 32, %s912, %s900
        $region48: #{tpu_custom_call.1} parent=31 // pred_fallthru
          _
      $region32: #{tpu_custom_call.1} parent=5 // pred_fallthru
        _
      %p918 = scmp.le.s32.totalorder 2, %s17
      // Predicated region
      $region49: #{tpu_custom_call.1} parent=5 // pred_check
        %p919 = pneg %p918
      $region50: #{tpu_custom_call.1} parent=5 // pred_check_branch
        %921 = sbr.rel (%p919) target = $region52
      $region51: #{tpu_custom_call.1} parent=5 // pred_region
        %s922 = ssub.s32 %s17, 2
        // Predicated region
        $region53: #{tpu_custom_call.1} parent=51 // pred_check
          %p923 = pneg %p114
        $region54: #{tpu_custom_call.1} parent=51 // pred_check_branch
          %925 = sbr.rel (%p923) target = $region56
        $region55: #{tpu_custom_call.1} parent=51 // pred_region
          %s926 = sand.u32 %s99, 1
          %s927 = scalar_lea.sflag [#allocation4], %s926
          %s928 = sand.u32 %s99, 1
          %s929 = smul.addr %s928, 2
          %s930 = scalar_lea.vmem [#allocation9], %s929
          %931 = dma.done %s927, 32
        $region56: #{tpu_custom_call.1} parent=51 // pred_fallthru
          _
      $region52: #{tpu_custom_call.1} parent=5 // pred_fallthru
        _
    $region6: #{tpu_custom_call.1} parent=1 // loop_footer
      %s21 = sadd.s32 1, %s17
    $region7: #{tpu_custom_call.1} parent=1 // loop_footer_branch
      %16 = sbr.rel target = $region3
    $region8: #{tpu_custom_call.1} parent=1 // loop_exit
      _
    %932 = vsyncpa [#allocation3], 1
    %s933 = scalar_lea.sflag [#allocation3], 1
    %934 = vsyncpa %s933, 1
    %935 = vsyncpa [#allocation8], 1
    %936 = vsyncpa [#allocation4], 1
    %s937 = scalar_lea.sflag [#allocation4], 1
    %938 = vsyncpa %s937, 1
    %939 = vsyncpa [#allocation5], 1
    %s940 = scalar_lea.sflag [#allocation5], 1
    %941 = vsyncpa %s940, 1

</llo_original>
